<compile_context>
chip_gen: v7x
topology: tpu7x:2x2x1
jax: 0.10.0
libtpu: 0.0.40
codegen_flags: <defaults>
</compile_context>

<pallas_src>
import functools

import jax
import jax.numpy as jnp
import numpy as np
from jax.experimental import pallas as pl
from jax.experimental.pallas import tpu as pltpu

EPS = 1e-6          # matches utils.basic.EPS used by reduce_masked_mean
LANES = 128
SUBLANES = 8


def _cdiv(a, b):
    return -(-a // b)


def _round_up(x, m):
    return ((x + m - 1) // m) * m


def _device_kind():
    try:
        return jax.devices()[0].device_kind.lower()
    except Exception:
        return ""


def _num_core_splits():
    # 2 TensorCores per chip on v7x (and megacore v4/v5p); 1 on v5e/v6e.
    kind = _device_kind()
    if any(tag in kind for tag in ("v7", "v5p", "v4")):
        return 2
    return 1


def _target_block_bytes():
    # Per-operand, per-pipeline-buffer VMEM budget (sized for f32 worst case).
    kind = _device_kind()
    if "v6" in kind or "v7" in kind:
        return 4 << 20      # 3 inputs x 2 buffers x 4 MiB = 24 MiB
    return 2 << 20          # v5e: stay well under its 16 MiB default scoped VMEM


def _masked_bce_kernel(ypred_ref, ytgt_ref, valid_ref, num_ref, den_ref, *,
                       pos_weight, total_rows, block_rows):
    p = pl.program_id(0)               # core-split axis ("parallel")
    t = pl.program_id(1)               # reduction axis ("arbitrary")
    n_inner = pl.num_programs(1)

    @pl.when(t == 0)
    def _():
        num_ref[...] = jnp.zeros_like(num_ref)
        den_ref[...] = jnp.zeros_like(den_ref)

    block_idx = p * n_inner + t
    row0 = block_idx * block_rows
    in_range = row0 < total_rows                      # overflow (clamped) block?
    is_full = row0 + block_rows <= total_rows         # no tail rows to mask?

    @pl.when(in_range)
    def _():
        x = ypred_ref[...].astype(jnp.float32)
        y = ytgt_ref[...].astype(jnp.float32)
        v = valid_ref[...].astype(jnp.float32)

        # Numerically stable BCE-with-logits with pos_weight folded:
        #   softplus(-x) = max(-x, 0) + log1p(exp(-|x|))
        #   loss = (1 - y) * x + (1 + (pos_weight - 1) * y) * softplus(-x)
        # (exp and log1p issued back-to-back so the single EUP pipeline stays full.)
        sp_negx = jnp.maximum(-x, 0.0) + jnp.log1p(jnp.exp(-jnp.abs(x)))
        loss = (1.0 - y) * x + (1.0 + (pos_weight - 1.0) * y) * sp_negx
        num_c = loss * v
        w = x.shape[-1]

        # Fast path: full block, pure VPU adds into the resident (8, 128)
        # accumulator blocks — no iota / compare / select per element.
        @pl.when(is_full)
        def _():
            num_ref[...] += jnp.sum(num_c.reshape(-1, SUBLANES, w), axis=0)
            den_ref[...] += jnp.sum(v.reshape(-1, SUBLANES, w), axis=0)

        # Slow path: only the (at most one) partial tail block pays for masking.
        @pl.when(jnp.logical_not(is_full))
        def _():
            row_ids = row0 + jax.lax.broadcasted_iota(jnp.int32, x.shape, 0)
            ok = row_ids < total_rows
            num_m = jnp.where(ok, num_c, 0.0)
            den_m = jnp.where(ok, v, 0.0)
            num_ref[...] += jnp.sum(num_m.reshape(-1, SUBLANES, w), axis=0)
            den_ref[...] += jnp.sum(den_m.reshape(-1, SUBLANES, w), axis=0)


def _as_2d(a):
    """Lane-dense (rows, 128) view of `a`; copy-free when size % 128 == 0."""
    if a.dtype == jnp.bool_:
        a = a.astype(jnp.int8)          # bool streams go in as int8
    n = a.size
    flat_tile = SUBLANES * LANES        # 1024
    if n >= flat_tile and n % LANES == 0:
        return a.reshape(n // LANES, LANES)        # free reshape, lane-dense
    # Narrow/odd shapes: flat-pad once to whole (8,128) tiles. Padded zeros
    # contribute 0 to both numerator and denominator (valid = 0 there).
    n_pad = _round_up(max(n, flat_tile), flat_tile)
    flat = jnp.pad(a.reshape(-1), (0, n_pad - n))
    return flat.reshape(-1, LANES)


def simple_loss(ypred, ytgt, valid, pos_weight=2.13):
    """Pallas equivalent of SimpleLoss.forward(ypred, ytgt, valid) -> scalar."""
    assert ypred.shape == ytgt.shape == valid.shape

    yp2d = _as_2d(ypred)
    yt2d = _as_2d(ytgt)
    v2d = _as_2d(valid)
    rows, w = yp2d.shape                # w == 128 always (lane dense)

    # Block sizing: big lane-dense blocks, rounded to sublane multiples.
    n_tc = _num_core_splits()
    target_rows = max(SUBLANES, _target_block_bytes() // (w * 4))   # mult of 32
    block_rows = min(target_rows, max(SUBLANES, (rows // SUBLANES) * SUBLANES))
    if n_tc > 1:
        # Make sure each TensorCore gets at least one block of work.
        per_core = max(SUBLANES, _round_up(_cdiv(rows, n_tc), SUBLANES))
        block_rows = min(block_rows, per_core)

    total_blocks = _cdiv(rows, block_rows)
    num_splits = min(n_tc, total_blocks)
    inner = _cdiv(total_blocks, num_splits)

    def in_map(p, t):
        # Clamp so the DMA always targets a valid block; the kernel skips the
        # compute of any (overflow) block past the end via pl.when.
        return (jnp.minimum(p * inner + t, total_blocks - 1), 0)

    in_spec = pl.BlockSpec((block_rows, w), in_map)
    out_spec = pl.BlockSpec((SUBLANES, w), lambda p, t: (p, 0))
    out_rows = num_splits * SUBLANES

    # Scheduling hint for XLA: this is a multi-MB streaming reduction.
    n_elems = rows * w
    in_bytes = (int(yp2d.size) * yp2d.dtype.itemsize
                + int(yt2d.size) * yt2d.dtype.itemsize
                + int(v2d.size) * v2d.dtype.itemsize)
    cost = pl.CostEstimate(flops=15 * n_elems,
                           transcendentals=2 * n_elems,
                           bytes_accessed=int(in_bytes + 2 * out_rows * w * 4))

    # Explicit VMEM budget: 3 inputs x 2 buffers x block (f32 worst case)
    # + headroom, clamped to [16, 32] MiB (safe on v5e/v6e/v7x).
    block_bytes = block_rows * w * 4
    vmem_limit = int(min(32 << 20, max(16 << 20, 6 * block_bytes + (4 << 20))))

    num, den = pl.pallas_call(
        functools.partial(_masked_bce_kernel,
                          pos_weight=float(pos_weight),
                          total_rows=rows,
                          block_rows=block_rows),
        out_shape=(jax.ShapeDtypeStruct((out_rows, w), jnp.float32),
                   jax.ShapeDtypeStruct((out_rows, w), jnp.float32)),
        grid_spec=pltpu.PrefetchScalarGridSpec(
            num_scalar_prefetch=0,
            grid=(num_splits, inner),
            in_specs=[in_spec, in_spec, in_spec],
            out_specs=(out_spec, out_spec),
        ),
        compiler_params=pltpu.CompilerParams(
            dimension_semantics=("parallel", "arbitrary"),
            vmem_limit_bytes=vmem_limit),
        cost_estimate=cost,
    )(yp2d, yt2d, v2d)

    # Tiny final cross-lane reduction + num/(EPS+den) combine in the wrapper.
    return jnp.sum(num) / (EPS + jnp.sum(den))


def _reference(ypred, ytgt, valid, pos_weight):
    x = ypred.astype(jnp.float32)
    y = ytgt.astype(jnp.float32)
    v = valid.astype(jnp.float32)
    sp_negx = jnp.maximum(-x, 0.0) + jnp.log1p(jnp.exp(-jnp.abs(x)))
    loss = pos_weight * y * sp_negx + (1.0 - y) * (x + sp_negx)
    return jnp.sum(loss * v) / (EPS + jnp.sum(v))


if __name__ == "__main__":
    pos_weight = 2.13  # deterministic "parameter" from SimpleLoss.__init__

    # BEV segmentation-style shapes: (B, n_classes=1, Z, X) logits / targets /
    # validity. Targets/validity fed as bf16 (narrow-dtype HBM streams; int8
    # would shave another ~1 B/elem if the caller provides it that way).
    B, C, H, W = 2, 1, 32, 32
    k1, k2, k3 = jax.random.split(jax.random.PRNGKey(0), 3)
    ypred = jax.random.normal(k1, (B, C, H, W), dtype=jnp.float32) * 3.0
    ytgt = (jax.random.uniform(k2, (B, C, H, W)) > 0.5).astype(jnp.bfloat16)
    valid = (jax.random.uniform(k3, (B, C, H, W)) > 0.3).astype(jnp.bfloat16)

    out = jax.block_until_ready(simple_loss(ypred, ytgt, valid, pos_weight))
    ref = _reference(ypred, ytgt, valid, pos_weight)
    assert np.allclose(np.asarray(out), np.asarray(ref), rtol=1e-5, atol=1e-5), \
        (out, ref)

    # Non-lane-dense shape: exercises the flat-pad-to-(8,128)-tiles path.
    B2, C2, H2, W2 = 2, 1, 20, 20
    k4, k5, k6 = jax.random.split(jax.random.PRNGKey(1), 3)
    yp2 = jax.random.normal(k4, (B2, C2, H2, W2), dtype=jnp.float32) * 3.0
    yt2 = (jax.random.uniform(k5, (B2, C2, H2, W2)) > 0.5).astype(jnp.float32)
    v2 = (jax.random.uniform(k6, (B2, C2, H2, W2)) > 0.3).astype(jnp.float32)
    out2 = jax.block_until_ready(simple_loss(yp2, yt2, v2, pos_weight))
    ref2 = _reference(yp2, yt2, v2, pos_weight)
    assert np.allclose(np.asarray(out2), np.asarray(ref2), rtol=1e-5, atol=1e-5), \
        (out2, ref2)

    # Lane-dense but rows not a multiple of the block (exercises the masked
    # tail slow path without any host-side padding).
    k7, k8, k9 = jax.random.split(jax.random.PRNGKey(2), 3)
    yp3 = jax.random.normal(k7, (2, 1, 40, 64), dtype=jnp.float32) * 3.0
    yt3 = (jax.random.uniform(k8, (2, 1, 40, 64)) > 0.5).astype(jnp.bfloat16)
    v3 = (jax.random.uniform(k9, (2, 1, 40, 64)) > 0.3).astype(jnp.bfloat16)
    out3 = jax.block_until_ready(simple_loss(yp3, yt3, v3, pos_weight))
    ref3 = _reference(yp3, yt3, v3, pos_weight)
    assert np.allclose(np.asarray(out3), np.asarray(ref3), rtol=1e-5, atol=1e-5), \
        (out3, ref3)

    print("KERNEL_OK")
</pallas_src>

<mosaic_0001>
module attributes {stable_mosaic.version = 11 : i64} {
  func.func @_masked_bce_kernel(%arg0: i32, %arg1: i32, %arg2: memref<16x128xf32, #tpu.memory_space<vmem>>, %arg3: memref<16x128xbf16, #tpu.memory_space<vmem>>, %arg4: memref<16x128xbf16, #tpu.memory_space<vmem>>, %arg5: memref<8x128xf32, #tpu.memory_space<vmem>>, %arg6: memref<8x128xf32, #tpu.memory_space<vmem>>) attributes {dimension_semantics = [#tpu.dimension_semantics<parallel>, #tpu.dimension_semantics<arbitrary>], iteration_bounds = array<i64: 1, 1>, scalar_prefetch = 0 : i64, scratch_operands = 0 : i64, tpu.core_type = #tpu.core_type<tc>, window_params = [{transform_indices = @transform_0, window_bounds = array<i64: 16, 128>}, {transform_indices = @transform_1, window_bounds = array<i64: 16, 128>}, {transform_indices = @transform_2, window_bounds = array<i64: 16, 128>}, {transform_indices = @transform_3, window_bounds = array<i64: 8, 128>}, {transform_indices = @transform_4, window_bounds = array<i64: 8, 128>}]} {
    %c0_i32 = arith.constant 0 : i32
    %0 = arith.cmpi eq, %arg1, %c0_i32 : i32
    %1 = arith.extui %0 : i1 to i32
    %c0_i32_0 = arith.constant 0 : i32
    %2 = arith.cmpi ne, %1, %c0_i32_0 : i32
    scf.if %2 {
      %cst = arith.constant 0.000000e+00 : f32
      %11 = vector.broadcast %cst : f32 to vector<8x128xf32>
      %c0 = arith.constant 0 : index
      %c0_5 = arith.constant 0 : index
      %12 = vector.load %arg5[%c0, %c0_5] : memref<8x128xf32, #tpu.memory_space<vmem>>, vector<8x128xf32>
      tpu.vector_store %arg5[%c0, %c0_5], %11 {strides = array<i32>} : memref<8x128xf32, #tpu.memory_space<vmem>>, vector<8x128xf32>,
      %cst_6 = arith.constant 0.000000e+00 : f32
      %13 = vector.broadcast %cst_6 : f32 to vector<8x128xf32>
      %c0_7 = arith.constant 0 : index
      %c0_8 = arith.constant 0 : index
      %14 = vector.load %arg6[%c0_7, %c0_8] : memref<8x128xf32, #tpu.memory_space<vmem>>, vector<8x128xf32>
      tpu.vector_store %arg6[%c0_7, %c0_8], %13 {strides = array<i32>} : memref<8x128xf32, #tpu.memory_space<vmem>>, vector<8x128xf32>,
    } else {
    }
    %c1_i32 = arith.constant 1 : i32
    %3 = arith.muli %arg0, %c1_i32 : i32
    %4 = arith.addi %3, %arg1 : i32
    %c16_i32 = arith.constant 16 : i32
    %5 = arith.muli %4, %c16_i32 : i32
    %c16_i32_1 = arith.constant 16 : i32
    %6 = arith.cmpi slt, %5, %c16_i32_1 : i32
    %c16_i32_2 = arith.constant 16 : i32
    %7 = arith.addi %5, %c16_i32_2 : i32
    %c16_i32_3 = arith.constant 16 : i32
    %8 = arith.cmpi sle, %7, %c16_i32_3 : i32
    %9 = arith.extui %6 : i1 to i32
    %c0_i32_4 = arith.constant 0 : i32
    %10 = arith.cmpi ne, %9, %c0_i32_4 : i32
    scf.if %10 {
      %c0 = arith.constant 0 : index
      %c0_5 = arith.constant 0 : index
      %11 = vector.load %arg2[%c0, %c0_5] : memref<16x128xf32, #tpu.memory_space<vmem>>, vector<16x128xf32>
      %c0_6 = arith.constant 0 : index
      %c0_7 = arith.constant 0 : index
      %12 = vector.load %arg3[%c0_6, %c0_7] : memref<16x128xbf16, #tpu.memory_space<vmem>>, vector<16x128xbf16>
      %13 = arith.extf %12 : vector<16x128xbf16> to vector<16x128xf32>
      %c0_8 = arith.constant 0 : index
      %c0_9 = arith.constant 0 : index
      %14 = vector.load %arg4[%c0_8, %c0_9] : memref<16x128xbf16, #tpu.memory_space<vmem>>, vector<16x128xbf16>
      %15 = arith.extf %14 : vector<16x128xbf16> to vector<16x128xf32>
      %cst = arith.constant 0.000000e+00 : f32
      %16 = vector.broadcast %cst : f32 to vector<16x128xf32>
      %17 = arith.subf %16, %11 : vector<16x128xf32>
      %cst_10 = arith.constant 0.000000e+00 : f32
      %18 = vector.broadcast %cst_10 : f32 to vector<16x128xf32>
      %19 = arith.maximumf %17, %18 : vector<16x128xf32>
      %20 = math.absf %11 : vector<16x128xf32>
      %cst_11 = arith.constant 0.000000e+00 : f32
      %21 = vector.broadcast %cst_11 : f32 to vector<16x128xf32>
      %22 = arith.subf %21, %20 : vector<16x128xf32>
      %23 = math.exp %22 : vector<16x128xf32>
      %24 = math.log1p %23 : vector<16x128xf32>
      %25 = arith.addf %19, %24 : vector<16x128xf32>
      %cst_12 = arith.constant 1.000000e+00 : f32
      %26 = vector.broadcast %cst_12 : f32 to vector<16x128xf32>
      %27 = arith.subf %26, %13 : vector<16x128xf32>
      %28 = arith.mulf %27, %11 : vector<16x128xf32>
      %cst_13 = arith.constant 1.130000e+00 : f32
      %29 = vector.broadcast %cst_13 : f32 to vector<16x128xf32>
      %30 = arith.mulf %29, %13 : vector<16x128xf32>
      %cst_14 = arith.constant 1.000000e+00 : f32
      %31 = vector.broadcast %cst_14 : f32 to vector<16x128xf32>
      %32 = arith.addf %31, %30 : vector<16x128xf32>
      %33 = arith.mulf %32, %25 : vector<16x128xf32>
      %34 = arith.addf %28, %33 : vector<16x128xf32>
      %35 = arith.mulf %34, %15 : vector<16x128xf32>
      %36 = arith.extui %8 : i1 to i32
      %c0_i32_15 = arith.constant 0 : i32
      %37 = arith.cmpi ne, %36, %c0_i32_15 : i32
      scf.if %37 {
        %c0_17 = arith.constant 0 : index
        %c0_18 = arith.constant 0 : index
        %41 = vector.load %arg5[%c0_17, %c0_18] : memref<8x128xf32, #tpu.memory_space<vmem>>, vector<8x128xf32>
        %42 = vector.shape_cast %35 : vector<16x128xf32> to vector<2x8x128xf32>
        %cst_19 = arith.constant dense<0.000000e+00> : vector<8x128xf32>
        %43 = vector.multi_reduction <add>, %42, %cst_19 [0] : vector<2x8x128xf32> to vector<8x128xf32>
        %44 = arith.addf %41, %43 : vector<8x128xf32>
        %c0_20 = arith.constant 0 : index
        %c0_21 = arith.constant 0 : index
        %45 = vector.load %arg5[%c0_20, %c0_21] : memref<8x128xf32, #tpu.memory_space<vmem>>, vector<8x128xf32>
        tpu.vector_store %arg5[%c0_20, %c0_21], %44 {strides = array<i32>} : memref<8x128xf32, #tpu.memory_space<vmem>>, vector<8x128xf32>,
        %c0_22 = arith.constant 0 : index
        %c0_23 = arith.constant 0 : index
        %46 = vector.load %arg6[%c0_22, %c0_23] : memref<8x128xf32, #tpu.memory_space<vmem>>, vector<8x128xf32>
        %47 = vector.shape_cast %15 : vector<16x128xf32> to vector<2x8x128xf32>
        %cst_24 = arith.constant dense<0.000000e+00> : vector<8x128xf32>
        %48 = vector.multi_reduction <add>, %47, %cst_24 [0] : vector<2x8x128xf32> to vector<8x128xf32>
        %49 = arith.addf %46, %48 : vector<8x128xf32>
        %c0_25 = arith.constant 0 : index
        %c0_26 = arith.constant 0 : index
        %50 = vector.load %arg6[%c0_25, %c0_26] : memref<8x128xf32, #tpu.memory_space<vmem>>, vector<8x128xf32>
        tpu.vector_store %arg6[%c0_25, %c0_26], %49 {strides = array<i32>} : memref<8x128xf32, #tpu.memory_space<vmem>>, vector<8x128xf32>,
      } else {
      }
      %true = arith.constant true
      %38 = arith.xori %8, %true : i1
      %39 = arith.extui %38 : i1 to i32
      %c0_i32_16 = arith.constant 0 : i32
      %40 = arith.cmpi ne, %39, %c0_i32_16 : i32
      scf.if %40 {
        %41 = tpu.iota {dimensions = array<i32: 0>} : vector<16x128xi32>
        %42 = vector.broadcast %5 : i32 to vector<16x128xi32>
        %43 = arith.addi %42, %41 : vector<16x128xi32>
        %c16_i32_17 = arith.constant 16 : i32
        %44 = vector.broadcast %c16_i32_17 : i32 to vector<16x128xi32>
        %45 = arith.cmpi slt, %43, %44 : vector<16x128xi32>
        %cst_18 = arith.constant 0.000000e+00 : f32
        %46 = vector.broadcast %cst_18 : f32 to vector<16x128xf32>
        %47 = arith.select %45, %35, %46 : vector<16x128xi1>, vector<16x128xf32>
        %cst_19 = arith.constant 0.000000e+00 : f32
        %48 = vector.broadcast %cst_19 : f32 to vector<16x128xf32>
        %49 = arith.select %45, %15, %48 : vector<16x128xi1>, vector<16x128xf32>
        %c0_20 = arith.constant 0 : index
        %c0_21 = arith.constant 0 : index
        %50 = vector.load %arg5[%c0_20, %c0_21] : memref<8x128xf32, #tpu.memory_space<vmem>>, vector<8x128xf32>
        %51 = vector.shape_cast %47 : vector<16x128xf32> to vector<2x8x128xf32>
        %cst_22 = arith.constant dense<0.000000e+00> : vector<8x128xf32>
        %52 = vector.multi_reduction <add>, %51, %cst_22 [0] : vector<2x8x128xf32> to vector<8x128xf32>
        %53 = arith.addf %50, %52 : vector<8x128xf32>
        %c0_23 = arith.constant 0 : index
        %c0_24 = arith.constant 0 : index
        %54 = vector.load %arg5[%c0_23, %c0_24] : memref<8x128xf32, #tpu.memory_space<vmem>>, vector<8x128xf32>
        tpu.vector_store %arg5[%c0_23, %c0_24], %53 {strides = array<i32>} : memref<8x128xf32, #tpu.memory_space<vmem>>, vector<8x128xf32>,
        %c0_25 = arith.constant 0 : index
        %c0_26 = arith.constant 0 : index
        %55 = vector.load %arg6[%c0_25, %c0_26] : memref<8x128xf32, #tpu.memory_space<vmem>>, vector<8x128xf32>
        %56 = vector.shape_cast %49 : vector<16x128xf32> to vector<2x8x128xf32>
        %cst_27 = arith.constant dense<0.000000e+00> : vector<8x128xf32>
        %57 = vector.multi_reduction <add>, %56, %cst_27 [0] : vector<2x8x128xf32> to vector<8x128xf32>
        %58 = arith.addf %55, %57 : vector<8x128xf32>
        %c0_28 = arith.constant 0 : index
        %c0_29 = arith.constant 0 : index
        %59 = vector.load %arg6[%c0_28, %c0_29] : memref<8x128xf32, #tpu.memory_space<vmem>>, vector<8x128xf32>
        tpu.vector_store %arg6[%c0_28, %c0_29], %58 {strides = array<i32>} : memref<8x128xf32, #tpu.memory_space<vmem>>, vector<8x128xf32>,
      } else {
      }
    } else {
    }
    return
  }
  func.func @transform_0(%arg0: i32, %arg1: i32) -> (i32, i32) {
    %c1_i32 = arith.constant 1 : i32
    %0 = arith.muli %arg0, %c1_i32 : i32
    %1 = arith.addi %0, %arg1 : i32
    %c0_i32 = arith.constant 0 : i32
    %2 = arith.minsi %1, %c0_i32 : i32
    %c0_i32_0 = arith.constant 0 : i32
    %c0_i32_1 = arith.constant 0 : i32
    return %2, %c0_i32_0 : i32, i32
  }
  func.func @transform_1(%arg0: i32, %arg1: i32) -> (i32, i32) {
    %c1_i32 = arith.constant 1 : i32
    %0 = arith.muli %arg0, %c1_i32 : i32
    %1 = arith.addi %0, %arg1 : i32
    %c0_i32 = arith.constant 0 : i32
    %2 = arith.minsi %1, %c0_i32 : i32
    %c0_i32_0 = arith.constant 0 : i32
    %c0_i32_1 = arith.constant 0 : i32
    return %2, %c0_i32_0 : i32, i32
  }
  func.func @transform_2(%arg0: i32, %arg1: i32) -> (i32, i32) {
    %c1_i32 = arith.constant 1 : i32
    %0 = arith.muli %arg0, %c1_i32 : i32
    %1 = arith.addi %0, %arg1 : i32
    %c0_i32 = arith.constant 0 : i32
    %2 = arith.minsi %1, %c0_i32 : i32
    %c0_i32_0 = arith.constant 0 : i32
    %c0_i32_1 = arith.constant 0 : i32
    return %2, %c0_i32_0 : i32, i32
  }
  func.func @transform_3(%arg0: i32, %arg1: i32) -> (i32, i32) {
    %c0_i32 = arith.constant 0 : i32
    %c0_i32_0 = arith.constant 0 : i32
    return %arg0, %c0_i32 : i32, i32
  }
  func.func @transform_4(%arg0: i32, %arg1: i32) -> (i32, i32) {
    %c0_i32 = arith.constant 0 : i32
    %c0_i32_0 = arith.constant 0 : i32
    return %arg0, %c0_i32 : i32, i32
  }
}

</mosaic_0001>

<llo_original>
// kernel: tpu_custom_call.1
$region0: #{tpu_custom_call.1}
  #allocation0 [shape = 'u32[]', space=smem, size = 0x4, offset = 0x4, fixed_abs, tag = 'smem constant byte address 0x4 - core index']
  #allocation1 [shape = 'u32[144,128]{1,0:T(1,128)}', space=vmem, size = 0x12000, scoped, tag = 'internal scratch']
  %s0 = inlined_call_operand.hbm [shape: f32[16,128], index: 0, kind: input, shape index: {}]
  %s1 = inlined_call_operand.hbm [shape: bf16[16,128], index: 1, kind: input, shape index: {}]
  %s2 = inlined_call_operand.hbm [shape: bf16[16,128], index: 2, kind: input, shape index: {}]
  %s3 = inlined_call_operand.hbm [shape: f32[8,128], index: 3, kind: output, shape index: {0}]
  %s4 = inlined_call_operand.hbm [shape: f32[8,128], index: 4, kind: output, shape index: {1}]
  %5 = xla_tuple %s3, %s4
  %s6 = sld [smem:[#allocation0]]
  $region58: #{tpu_custom_call.1} parent=0
    _
  %s8 = ssub.s32 1, %s6
  %s9 = scalar_select 0, %s8, %s6
  $region1: #{tpu_custom_call.1} parent=0
    #allocation2 [shape = 'u8[8192]{0}', space=vmem, size = 0x2000, scoped, tag = 'input window, operand 0, single buffered']
    #allocation3 [shape = 's32[1]{0}', space=sflag, size = 0x4, scoped, tag = 'scoped memory for tpu_custom_call.1']
    #allocation4 [shape = 's32[1]{0}', space=sflag, size = 0x4, scoped, tag = 'scoped memory for tpu_custom_call.1']
    #allocation5 [shape = 'u8[4096]{0}', space=vmem, size = 0x1000, scoped, tag = 'input window, operand 1, single buffered']
    #allocation6 [shape = 's32[1]{0}', space=sflag, size = 0x4, scoped, tag = 'scoped memory for tpu_custom_call.1']
    #allocation7 [shape = 'u8[4096]{0}', space=vmem, size = 0x1000, scoped, tag = 'input window, operand 2, single buffered']
    #allocation8 [shape = 'u8[4096]{0}', space=vmem, size = 0x1000, scoped, tag = 'output window, operand 0, single buffered']
    #allocation9 [shape = 'u8[4096]{0}', space=vmem, size = 0x1000, scoped, tag = 'output window, operand 1, single buffered']
    #allocation10 [shape = 's32[1]{0}', space=sflag, size = 0x4, scoped, tag = 'scoped memory for tpu_custom_call.1']
    %10 = vsyncpa [#allocation3], 0
    %11 = vsyncpa [#allocation6], 0
    %12 = vsyncpa [#allocation4], 0
    %13 = vsyncpa [#allocation10], 0
    // Predicated region
    $region2: #{tpu_custom_call.1} parent=1 // pred_check
      _
    $region3: #{tpu_custom_call.1} parent=1 // pred_check_branch
      %15 = sbr.rel (0) target = $region5
    $region4: #{tpu_custom_call.1} parent=1 // pred_region
      %s16 = sadd.s32 0, 0
      %p17 = scmp.lt.s32.totalorder %s16, 0
      %s18 = scalar_select %p17, %s16, 0
      %s19 = smul.u32 2, %s18
      %s21 = ssub.s32 256, 256
      %22 = vsyncadd [#allocation3], %s21
      %s23 = smul.addr %s19, 128
      %s24 = scalar_lea.hbm %s0, %s23
      %s25 = sshll.u32 [#allocation2], 4
      %s26 = int_to_ptr.vmem [resolvable:$true] %s25
      %31 = dma.hbm_to_vmem [thread:$0]  %s24, 256, %s26, [#allocation3], 128, 128, 8
    $region5: #{tpu_custom_call.1} parent=1 // pred_fallthru
      _
    // Predicated region
    $region6: #{tpu_custom_call.1} parent=1 // pred_check
      _
    $region7: #{tpu_custom_call.1} parent=1 // pred_check_branch
      %33 = sbr.rel (0) target = $region9
    $region8: #{tpu_custom_call.1} parent=1 // pred_region
      %s34 = sadd.s32 0, 0
      %p35 = scmp.lt.s32.totalorder %s34, 0
      %s36 = scalar_select %p35, %s34, 0
      %s37 = smul.u32 2, %s36
      %s39 = ssub.s32 128, 128
      %40 = vsyncadd [#allocation6], %s39
      %s41 = smul.addr %s37, 64
      %s42 = scalar_lea.hbm %s1, %s41
      %s43 = sshll.u32 [#allocation5], 4
      %s44 = int_to_ptr.vmem [resolvable:$true] %s43
      %49 = dma.hbm_to_vmem [thread:$0]  %s42, 128, %s44, [#allocation6], 64, 64, 4
    $region9: #{tpu_custom_call.1} parent=1 // pred_fallthru
      _
    // Predicated region
    $region10: #{tpu_custom_call.1} parent=1 // pred_check
      _
    $region11: #{tpu_custom_call.1} parent=1 // pred_check_branch
      %51 = sbr.rel (0) target = $region13
    $region12: #{tpu_custom_call.1} parent=1 // pred_region
      %s52 = sadd.s32 0, 0
      %p53 = scmp.lt.s32.totalorder %s52, 0
      %s54 = scalar_select %p53, %s52, 0
      %s55 = smul.u32 2, %s54
      %s57 = ssub.s32 128, 128
      %58 = vsyncadd [#allocation6], %s57
      %s59 = smul.addr %s55, 64
      %s60 = scalar_lea.hbm %s2, %s59
      %s61 = sshll.u32 [#allocation7], 4
      %s62 = int_to_ptr.vmem [resolvable:$true] %s61
      %67 = dma.hbm_to_vmem [thread:$0]  %s60, 128, %s62, [#allocation6], 64, 64, 4
    $region13: #{tpu_custom_call.1} parent=1 // pred_fallthru
      _
    // Predicated region
    $region14: #{tpu_custom_call.1} parent=1 // pred_check
      _
    $region15: #{tpu_custom_call.1} parent=1 // pred_check_branch
      %69 = sbr.rel (0) target = $region17
    $region16: #{tpu_custom_call.1} parent=1 // pred_region
      %70 = dma.done [#allocation3], 256
    $region17: #{tpu_custom_call.1} parent=1 // pred_fallthru
      _
    // Predicated region
    $region18: #{tpu_custom_call.1} parent=1 // pred_check
      _
    $region19: #{tpu_custom_call.1} parent=1 // pred_check_branch
      %72 = sbr.rel (0) target = $region21
    $region20: #{tpu_custom_call.1} parent=1 // pred_region
      %73 = dma.done [#allocation6], 128
    $region21: #{tpu_custom_call.1} parent=1 // pred_fallthru
      _
    // Predicated region
    $region22: #{tpu_custom_call.1} parent=1 // pred_check
      _
    $region23: #{tpu_custom_call.1} parent=1 // pred_check_branch
      %75 = sbr.rel (0) target = $region25
    $region24: #{tpu_custom_call.1} parent=1 // pred_region
      %76 = dma.done [#allocation6], 128
    $region25: #{tpu_custom_call.1} parent=1 // pred_fallthru
      _
    %s77 = sadd.s32 0, 0
    %p78 = scmp.lt.s32.totalorder %s77, 0
    %s79 = scalar_select %p78, %s77, 0
    %s80 = smul.u32 2, %s79
    %s81 = sadd.s32 0, 0
    %p82 = scmp.lt.s32.totalorder %s81, 0
    %s83 = scalar_select %p82, %s81, 0
    %s84 = smul.u32 2, %s83
    %s85 = sadd.s32 0, 0
    %p86 = scmp.lt.s32.totalorder %s85, 0
    %s87 = scalar_select %p86, %s85, 0
    %s88 = smul.u32 2, %s87
    %p89 = scmp.eq.s32.totalorder 0, 0
    // Predicated region
    $region26: #{tpu_custom_call.1} parent=1 // pred_check
      %p90 = pneg %p89
    $region27: #{tpu_custom_call.1} parent=1 // pred_check_branch
      %92 = sbr.rel (%p90) target = $region29
    $region28: #{tpu_custom_call.1} parent=1 // pred_region
      %93 = vst [vmem:[#allocation8] sm:$0xff] 0.0
      %94 = vst [vmem:[#allocation9] sm:$0xff] 0.0
    $region29: #{tpu_custom_call.1} parent=1 // pred_fallthru
      _
    %s95 = sadd.s32 0, 0
    %s96 = smul.u32 %s95, 16
    %p97 = scmp.lt.s32.totalorder %s96, 16
    %s98 = sadd.s32 %s96, 16
    %p99 = scmp.le.s32.totalorder %s98, 16
    // Predicated region
    $region30: #{tpu_custom_call.1} parent=1 // pred_check
      %p100 = pneg %p97
    $region31: #{tpu_custom_call.1} parent=1 // pred_check_branch
      %102 = sbr.rel (%p100) target = $region33
    $region32: #{tpu_custom_call.1} parent=1 // pred_region
      %v103 = vld [vmem:[#allocation2] sm:$0xff]
      %v104 = vld [vmem:[#allocation2 + $0x8] sm:$0xff]
      %v105 = vld [vmem:[#allocation5] sm:$0xf]
      %v106 = vld [vmem:[#allocation5 + $0x4] sm:$0xf]
      %v107 = vunpack.c.l.bf16 %v105
      %v108 = vunpack.c.l.bf16 %v106
      %v109 = vld [vmem:[#allocation7] sm:$0xf]
      %v110 = vld [vmem:[#allocation7 + $0x4] sm:$0xf]
      %v111 = vunpack.c.l.bf16 %v109
      %v112 = vunpack.c.l.bf16 %v110
      %v113 = vsub.f32 0.0, %v103
      %v114 = vsub.f32 0.0, %v104
      %v115 = vmax.f32 %v113, 0.0
      %v116 = vmax.f32 %v114, 0.0
      %v117 = vand.u32 2147483647, %v103
      %v118 = vand.u32 2147483647, %v104
      %v119 = vsub.f32 0.0, %v117
      %v120 = vsub.f32 0.0, %v118
      %v121 = vmul.f32 %v119, 1.442695
      %v122 = vpow.pop %v121
      %v123 = vmul.f32 %v120, 1.442695
      %v124 = vpow.pop %v123
      %v125 = vadd.f32 %v122, 1.0
      %v126 = vlog2.pop %v125
      %v127 = vmul.f32 %v126, 0.6931472
      %v128 = vmul.f32 -0.5, %v122
      %v129 = vadd.f32 %v128, 1.0
      %v130 = vmul.f32 %v129, %v122
      %v131 = vand.u32 2147483647, %v122
      %vm132 = vcmp.lt.f32.partialorder %v131, 0.0004427343
      %v133 = vsel %vm132, %v130, %v127
      %v134 = vadd.f32 %v124, 1.0
      %v135 = vlog2.pop %v134
      %v136 = vmul.f32 %v135, 0.6931472
      %v137 = vmul.f32 -0.5, %v124
      %v138 = vadd.f32 %v137, 1.0
      %v139 = vmul.f32 %v138, %v124
      %v140 = vand.u32 2147483647, %v124
      %vm141 = vcmp.lt.f32.partialorder %v140, 0.0004427343
      %v142 = vsel %vm141, %v139, %v136
      %v143 = vadd.f32 %v115, %v133
      %v144 = vadd.f32 %v116, %v142
      %v145 = vsub.f32 1.0, %v107
      %v146 = vsub.f32 1.0, %v108
      %v147 = vmul.f32 %v145, %v103
      %v148 = vmul.f32 %v146, %v104
      %v149 = vmul.f32 %v107, 1.13
      %v150 = vmul.f32 %v108, 1.13
      %v151 = vadd.f32 %v149, 1.0
      %v152 = vadd.f32 %v150, 1.0
      %v153 = vmul.f32 %v151, %v143
      %v154 = vmul.f32 %v152, %v144
      %v155 = vadd.f32 %v147, %v153
      %v156 = vadd.f32 %v148, %v154
      %v157 = vmul.f32 %v155, %v111
      %v158 = vmul.f32 %v156, %v112
      // Predicated region
      $region34: #{tpu_custom_call.1} parent=32 // pred_check
        %p159 = pneg %p99
      $region35: #{tpu_custom_call.1} parent=32 // pred_check_branch
        %161 = sbr.rel (%p159) target = $region37
      $region36: #{tpu_custom_call.1} parent=32 // pred_region
        %v162 = vld [vmem:[#allocation8] sm:$0xff]
        %v163 = vadd.f32 %v157, %v158
        %v164 = vadd.f32 %v162, %v163
        %165 = vst [vmem:[#allocation8] sm:$0xff] %v164
        %v166 = vld [vmem:[#allocation9] sm:$0xff]
        %v167 = vadd.f32 %v111, %v112
        %v168 = vadd.f32 %v166, %v167
        %169 = vst [vmem:[#allocation9] sm:$0xff] %v168
      $region37: #{tpu_custom_call.1} parent=32 // pred_fallthru
        _
      %p170 = scmp.gt.s32.totalorder %s98, 16
      // Predicated region
      $region38: #{tpu_custom_call.1} parent=32 // pred_check
        %p171 = pneg %p170
      $region39: #{tpu_custom_call.1} parent=32 // pred_check_branch
        %173 = sbr.rel (%p171) target = $region41
      $region40: #{tpu_custom_call.1} parent=32 // pred_region
        %v174 = vlaneseq
        %v175 = vshrl.u32 %v174, 7
        %v176 = vadd.s32 %v175, 8
        %v177 = vstv %s96
        %v178 = vadd.s32 %v177, %v175
        %v179 = vadd.s32 %v177, %v176
        %vm180 = vcmp.lt.s32.totalorder %v178, 16
        %vm181 = vcmp.lt.s32.totalorder %v179, 16
        %v182 = vsel %vm180, %v157, 0.0
        %v183 = vsel %vm181, %v158, 0.0
        %v184 = vsel %vm180, %v111, 0.0
        %v185 = vsel %vm181, %v112, 0.0
        %v186 = vld [vmem:[#allocation8] sm:$0xff]
        %v187 = vadd.f32 %v182, %v183
        %v188 = vadd.f32 %v186, %v187
        %189 = vst [vmem:[#allocation8] sm:$0xff] %v188
        %v190 = vld [vmem:[#allocation9] sm:$0xff]
        %v191 = vadd.f32 %v184, %v185
        %v192 = vadd.f32 %v190, %v191
        %193 = vst [vmem:[#allocation9] sm:$0xff] %v192
      $region41: #{tpu_custom_call.1} parent=32 // pred_fallthru
        _
    $region33: #{tpu_custom_call.1} parent=1 // pred_fallthru
      _
    // Predicated region
    $region42: #{tpu_custom_call.1} parent=1 // pred_check
      _
    $region43: #{tpu_custom_call.1} parent=1 // pred_check_branch
      %195 = sbr.rel (0) target = $region45
    $region44: #{tpu_custom_call.1} parent=1 // pred_region
      %s197 = ssub.s32 128, 128
      %198 = vsyncadd [#allocation4], %s197
      %s200 = sshll.u32 [#allocation8], 4
      %s201 = int_to_ptr.vmem [resolvable:$true] %s200
      %203 = dma.vmem_to_hbm [thread:$0]  %s201, 128, %s3, [#allocation4]
    $region45: #{tpu_custom_call.1} parent=1 // pred_fallthru
      _
    // Predicated region
    $region46: #{tpu_custom_call.1} parent=1 // pred_check
      _
    $region47: #{tpu_custom_call.1} parent=1 // pred_check_branch
      %205 = sbr.rel (0) target = $region49
    $region48: #{tpu_custom_call.1} parent=1 // pred_region
      %s207 = ssub.s32 128, 128
      %208 = vsyncadd [#allocation10], %s207
      %s210 = sshll.u32 [#allocation9], 4
      %s211 = int_to_ptr.vmem [resolvable:$true] %s210
      %213 = dma.vmem_to_hbm [thread:$0]  %s211, 128, %s4, [#allocation10]
    $region49: #{tpu_custom_call.1} parent=1 // pred_fallthru
      _
    // Predicated region
    $region50: #{tpu_custom_call.1} parent=1 // pred_check
      _
    $region51: #{tpu_custom_call.1} parent=1 // pred_check_branch
      %215 = sbr.rel (0) target = $region53
    $region52: #{tpu_custom_call.1} parent=1 // pred_region
      %216 = dma.done [#allocation4], 128
    $region53: #{tpu_custom_call.1} parent=1 // pred_fallthru
      _
    // Predicated region
    $region54: #{tpu_custom_call.1} parent=1 // pred_check
      _
    $region55: #{tpu_custom_call.1} parent=1 // pred_check_branch
      %218 = sbr.rel (0) target = $region57
    $region56: #{tpu_custom_call.1} parent=1 // pred_region
      %219 = dma.done [#allocation10], 128
    $region57: #{tpu_custom_call.1} parent=1 // pred_fallthru
      _
    %220 = vsyncpa [#allocation3], 1
    %221 = vsyncpa [#allocation6], 1
    %222 = vsyncpa [#allocation4], 1
    %223 = vsyncpa [#allocation10], 1

</llo_original>
